<compile_context>
chip_gen: v6e
topology: v6e:2x2x1
jax: 0.10.0
libtpu: 0.0.40
codegen_flags: <defaults>
</compile_context>

<pallas_src>
import jax
import jax.numpy as jnp
from jax.experimental import pallas as pl
from jax.experimental.pallas import tpu as pltpu


# ----------------------------------------------------------------------------
# Kernel
# ----------------------------------------------------------------------------
def _attention_kernel(mask_ref, q_ref, pmem_ref, awc_ref, mem_ref,
                      wq_ref, wlocf_ref, wv_ref,
                      ctx_ref, attn_ref):
    f32 = jnp.float32
    BB, T, A = pmem_ref.shape
    K2 = wlocf_ref.shape[0]
    K = K2 // 2

    # processed_query = query_layer(query)                       -> (BB, attn)
    # bf16 x bf16 on the MXU, f32 accumulation.
    pq = jnp.dot(q_ref[...], wq_ref[...], preferred_element_type=f32)

    # Location branch: in-kernel im2col of the time-padded (BB, 2, T+K-1)
    # attention-weight history (K static lane-shifted slices -> XLU, hidden
    # under DMA), then ONE fused (conv o dense) matmul     -> (BB, T, attn)
    awc = awc_ref[...].astype(f32)
    cols = [awc[:, c, k:k + T] for c in range(2) for k in range(K)]
    slab = jnp.stack(cols, axis=-1)                              # (BB, T, 2K)
    loc = jnp.dot(slab.reshape(BB * T, K2), wlocf_ref[...],
                  preferred_element_type=f32).reshape(BB, T, A)

    # energies = v . tanh(pq + loc + processed_memory)           -> (BB, T)
    # lane-wise reduce over attn keeps T on the lane axis for the softmax.
    pre = jnp.tanh(pq[:, None, :] + loc + pmem_ref[...].astype(f32))
    e = jnp.sum(pre * wv_ref[...][None, :, :], axis=-1)

    # masked softmax over time (lane axis).  Fully-masked rows -> NaN, same as
    # the PyTorch / JAX reference behavior.
    e = jnp.where(mask_ref[...] != 0, -jnp.inf, e)
    m = jnp.max(e, axis=-1, keepdims=True)
    ex = jnp.exp(e - m)
    ssum = jnp.sum(ex, axis=-1, keepdims=True)
    attn = ex * pl.reciprocal(ssum, approx=True)                 # (BB, T)

    # attention_context = bmm(attn, memory) on the MXU           -> (BB, emb)
    ctx3 = jnp.einsum('bqt,bte->bqe',
                      attn.astype(mem_ref.dtype)[:, None, :], mem_ref[...],
                      preferred_element_type=f32)
    ctx_ref[...] = ctx3.reshape(BB, -1).astype(ctx_ref.dtype)    # dense (BB, emb)
    attn_ref[...] = attn.astype(attn_ref.dtype)                  # dense (BB, T)


# ----------------------------------------------------------------------------
# Block / VMEM planning
# ----------------------------------------------------------------------------
def _round_up(x, m):
    return ((x + m - 1) // m) * m


def _vmem_capacity_bytes():
    try:
        return int(pltpu.get_tpu_info().vmem_capacity_bytes)
    except Exception:
        return 64 << 20     # conservative (v7x per-core)


def _plan_blocks(B, T, emb_dim, attn_dim, rnn_dim, K, requested, vmem_cap):
    """Pick the batch block BB and an explicit vmem_limit_bytes."""
    Tp = T + K - 1
    # per-batch-row streamed bytes (bf16 memory/pmem/query, f32 mask/awc/outs)
    stream_row = (T * emb_dim * 2 + T * attn_dim * 2 + T * 4 + 2 * Tp * 4 +
                  rnn_dim * 2 + emb_dim * 4 + T * 4)
    # per-batch-row in-kernel intermediates (loc, pre, slab, e/ex/...)
    interm_row = T * attn_dim * 4 * 2 + T * 2 * K * 4 + T * 4 * 4
    weight_bytes = 2 * (rnn_dim * attn_dim * 2 + 2 * K * attn_dim * 4 +
                        attn_dim * 4)

    budget = int(vmem_cap * 0.45)           # headroom for compiler scratch
    bb = _round_up(requested, 8) if requested else 64
    bb = max(8, min(bb, _round_up(B, 8)))
    while bb > 8 and (2 * bb * stream_row + bb * interm_row + weight_bytes) > budget:
        bb -= 8
    # Keep >= 2 grid steps when possible so the "parallel" axis can shard
    # across both TensorCores on v7x.
    if B > 8 and _round_up(B, bb) // bb < 2:
        bb = max(8, _round_up(_round_up(B, 8) // 2, 8))

    est = 2 * bb * stream_row + bb * interm_row + weight_bytes
    vmem_limit = int(min(0.9 * vmem_cap, max(32 << 20, 1.4 * est)))
    return bb, vmem_limit


# ----------------------------------------------------------------------------
# Per-utterance preparation (hoist out of the decoder loop)
# ----------------------------------------------------------------------------
def prepare_attention_state(memory, processed_memory, mask, params,
                            *, block_b=None, stream_dtype=jnp.bfloat16):
    """Cast/pad the loop-invariant tensors and fuse the bias-free weights ONCE
    per utterance.  memory (B,T,emb); processed_memory (B,T,attn);
    mask (B,T) bool, True = padded position."""
    wq_t, wconv, wloc_t, wv = params
    B, T, emb_dim = memory.shape
    attn_dim = processed_memory.shape[-1]
    rnn_dim = wq_t.shape[0]
    K = wconv.shape[0]
    nf = wconv.shape[2]

    vmem_cap = _vmem_capacity_bytes()
    BB, vmem_limit = _plan_blocks(B, T, emb_dim, attn_dim, rnn_dim, K,
                                  block_b, vmem_cap)
    B_pad = _round_up(B, BB)
    pad_b = B_pad - B

    mem = memory.astype(stream_dtype)
    pmem = processed_memory.astype(stream_dtype)
    mask_i = mask.astype(jnp.int32)                      # lane-dense (B, T)
    if pad_b:
        mem = jnp.pad(mem, ((0, pad_b), (0, 0), (0, 0)))
        pmem = jnp.pad(pmem, ((0, pad_b), (0, 0), (0, 0)))
        mask_i = jnp.pad(mask_i, ((0, pad_b), (0, 0)))   # pad rows unmasked -> finite

    # Fuse the bias-free location_conv with the bias-free location_dense:
    #   (unfold @ Wconv) @ Wloc == unfold @ (Wconv @ Wloc)   (exact)
    wconv_flat = jnp.transpose(wconv, (1, 0, 2)).reshape(2 * K, nf)  # [(c,k)->c*K+k, f]
    wloc_fused = (wconv_flat @ wloc_t).astype(jnp.float32)           # (2K, attn)
    wq_s = wq_t.astype(stream_dtype)                                 # (rnn, attn)
    wv_row = wv.reshape(1, attn_dim).astype(jnp.float32)             # (1, attn)

    return dict(B=B, T=T, emb_dim=emb_dim, attn_dim=attn_dim, rnn_dim=rnn_dim,
                K=K, BB=BB, B_pad=B_pad, vmem_limit=vmem_limit,
                stream_dtype=stream_dtype,
                mem=mem, pmem=pmem, mask_i=mask_i,
                wq=wq_s, wloc_fused=wloc_fused, wv_row=wv_row)


# ----------------------------------------------------------------------------
# Per-decoder-step call
# ----------------------------------------------------------------------------
def attention_step(state, query, attention_weights_cat):
    """query (B, rnn_dim); attention_weights_cat (B, 2, T) [PyTorch NCL].
    Returns (attention_context (B, emb), attention_weights (B, T))."""
    s = state
    B, T, BB, B_pad = s['B'], s['T'], s['BB'], s['B_pad']
    emb_dim, attn_dim, rnn_dim, K = s['emb_dim'], s['attn_dim'], s['rnn_dim'], s['K']
    pad = (K - 1) // 2
    Tp = T + K - 1
    pad_b = B_pad - B

    q = query.astype(s['stream_dtype'])
    awc = attention_weights_cat.astype(jnp.float32)
    # Only the tiny per-step tensors are padded here (time pad feeds the
    # in-kernel im2col); the big per-utterance tensors were prepared once.
    awc_p = jnp.pad(awc, ((0, pad_b), (0, 0), (pad, pad)))       # (B_pad, 2, Tp)
    if pad_b:
        q = jnp.pad(q, ((0, pad_b), (0, 0)))

    ctx, attn = pl.pallas_call(
        _attention_kernel,
        grid=(B_pad // BB,),
        in_specs=[
            pl.BlockSpec((BB, T), lambda b: (b, 0)),                 # mask (lane-dense)
            pl.BlockSpec((BB, rnn_dim), lambda b: (b, 0)),           # query (bf16)
            pl.BlockSpec((BB, T, attn_dim), lambda b: (b, 0, 0)),    # processed_memory (bf16)
            pl.BlockSpec((BB, 2, Tp), lambda b: (b, 0, 0)),          # padded attn-weight history
            pl.BlockSpec((BB, T, emb_dim), lambda b: (b, 0, 0)),     # memory (bf16)
            pl.BlockSpec((rnn_dim, attn_dim), lambda b: (0, 0)),     # query_layer.weight^T (bf16)
            pl.BlockSpec((2 * K, attn_dim), lambda b: (0, 0)),       # fused conv+dense weight
            pl.BlockSpec((1, attn_dim), lambda b: (0, 0)),           # v.weight (row)
        ],
        out_specs=[
            pl.BlockSpec((BB, emb_dim), lambda b: (b, 0)),           # context (lane/sublane dense)
            pl.BlockSpec((BB, T), lambda b: (b, 0)),                 # attn weights (lane-dense)
        ],
        out_shape=[
            jax.ShapeDtypeStruct((B_pad, emb_dim), jnp.float32),
            jax.ShapeDtypeStruct((B_pad, T), jnp.float32),
        ],
        compiler_params=pltpu.CompilerParams(
            dimension_semantics=("parallel",),
            vmem_limit_bytes=s['vmem_limit']),
    )(s['mask_i'], q, s['pmem'], awc_p, s['mem'],
      s['wq'], s['wloc_fused'], s['wv_row'])

    return ctx[:B], attn[:B]


def attention_forward(query, memory, processed_memory, attention_weights_cat,
                      mask, params, *, block_b=None, stream_dtype=jnp.bfloat16):
    """Convenience one-shot wrapper.  In a real Tacotron decoder loop, call
    prepare_attention_state() once per utterance and attention_step() per step."""
    state = prepare_attention_state(memory, processed_memory, mask, params,
                                    block_b=block_b, stream_dtype=stream_dtype)
    return attention_step(state, query, attention_weights_cat)


# ----------------------------------------------------------------------------
# Parameters + pure-JAX reference
# ----------------------------------------------------------------------------
def init_params(key, rnn_dim, attn_dim, n_filters, kernel_size):
    k1, k2, k3, k4 = jax.random.split(key, 4)

    def xavier(k, shape, fan_in, fan_out, gain=1.0):
        bound = gain * jnp.sqrt(6.0 / (fan_in + fan_out))
        return jax.random.uniform(k, shape, jnp.float32, -bound, bound)

    gain_tanh = 5.0 / 3.0
    # torch query_layer.weight (attn, rnn) -> stored transposed (rnn, attn)
    wq_t = xavier(k1, (rnn_dim, attn_dim), rnn_dim, attn_dim, gain_tanh)
    # torch location_conv.weight (nf, 2, K) -> stored as (K, 2, nf)
    wconv = xavier(k2, (kernel_size, 2, n_filters),
                   2 * kernel_size, n_filters * kernel_size)
    # torch location_dense.weight (attn, nf) -> (nf, attn)
    wloc_t = xavier(k3, (n_filters, attn_dim), n_filters, attn_dim, gain_tanh)
    # torch v.weight (1, attn) -> (attn, 1)
    wv = xavier(k4, (attn_dim, 1), attn_dim, 1)
    return wq_t, wconv, wloc_t, wv


def reference_forward(query, memory, processed_memory, attention_weights_cat,
                      mask, params):
    wq_t, wconv, wloc_t, wv = params
    B, T, _ = memory.shape
    K = wconv.shape[0]
    pad = (K - 1) // 2
    pq = query @ wq_t                                              # (B, attn)
    awc_pad = jnp.pad(attention_weights_cat, ((0, 0), (0, 0), (pad, pad)))
    conv = jnp.zeros((B, T, wconv.shape[2]), jnp.float32)
    for k in range(K):
        conv = conv + jnp.einsum('bct,cf->btf', awc_pad[:, :, k:k + T], wconv[k])
    loc = conv @ wloc_t                                            # (B, T, attn)
    pre = jnp.tanh(pq[:, None, :] + loc + processed_memory)
    e = (pre @ wv)[..., 0]                                         # (B, T)
    e = jnp.where(mask, -jnp.inf, e)
    attn = jax.nn.softmax(e, axis=1)
    ctx = jnp.einsum('bt,bte->be', attn, memory)
    return ctx, attn


# ----------------------------------------------------------------------------
# Demo
# ----------------------------------------------------------------------------
if __name__ == "__main__":
    B, T = 2, 8
    rnn_dim, emb_dim, attn_dim = 32, 32, 16
    n_filters, kernel_size = 4, 3

    key = jax.random.PRNGKey(0)
    kp, kq, km, ka, kw = jax.random.split(key, 5)
    params = init_params(kp, rnn_dim, attn_dim, n_filters, kernel_size)

    query = jax.random.normal(kq, (B, rnn_dim), jnp.float32)
    memory = jax.random.normal(km, (B, T, emb_dim), jnp.float32)
    # processed_memory would come from memory_layer(memory); Attention.forward
    # treats it as an input, so feed a deterministic tensor directly.
    processed_memory = 0.5 * jax.random.normal(ka, (B, T, attn_dim), jnp.float32)

    prev = jax.nn.softmax(jax.random.normal(kw, (B, T)), axis=-1)
    cum = jnp.cumsum(prev, axis=-1)
    attention_weights_cat = jnp.stack([prev, cum], axis=1)          # (B, 2, T)

    lengths = jnp.array([T, T - 2], jnp.int32)
    mask = jnp.arange(T)[None, :] >= lengths[:, None]               # True = padded

    # Per-utterance prep hoisted out of the (single, here) decoder step.
    state = prepare_attention_state(memory, processed_memory, mask, params)
    ctx, attn = attention_step(state, query, attention_weights_cat)
    jax.block_until_ready((ctx, attn))

    ctx_r, attn_r = reference_forward(query, memory, processed_memory,
                                      attention_weights_cat, mask, params)
    # bf16 streaming of memory/processed_memory/query + approx reciprocal ->
    # ~1e-3-level differences vs the pure-f32 reference (not bit-exact).
    assert jnp.allclose(ctx, ctx_r, atol=2e-2, rtol=2e-2), "context mismatch"
    assert jnp.allclose(attn, attn_r, atol=2e-2, rtol=2e-2), "attn weights mismatch"

    print("KERNEL_OK")
</pallas_src>

<mosaic_0001>
module attributes {stable_mosaic.version = 11 : i64} {
  func.func @_attention_kernel(%arg0: i32, %arg1: memref<8x8xi32, #tpu.memory_space<vmem>>, %arg2: memref<8x32xbf16, #tpu.memory_space<vmem>>, %arg3: memref<8x8x16xbf16, #tpu.memory_space<vmem>>, %arg4: memref<8x2x10xf32, #tpu.memory_space<vmem>>, %arg5: memref<8x8x32xbf16, #tpu.memory_space<vmem>>, %arg6: memref<32x16xbf16, #tpu.memory_space<vmem>>, %arg7: memref<6x16xf32, #tpu.memory_space<vmem>>, %arg8: memref<1x16xf32, #tpu.memory_space<vmem>>, %arg9: memref<8x32xf32, #tpu.memory_space<vmem>>, %arg10: memref<8x8xf32, #tpu.memory_space<vmem>>) attributes {dimension_semantics = [#tpu.dimension_semantics<parallel>], iteration_bounds = array<i64: 1>, scalar_prefetch = 0 : i64, scratch_operands = 0 : i64, tpu.core_type = #tpu.core_type<tc>, window_params = [{transform_indices = @transform_0, window_bounds = array<i64: 8, 8>}, {transform_indices = @transform_1, window_bounds = array<i64: 8, 32>}, {transform_indices = @transform_2, window_bounds = array<i64: 8, 8, 16>}, {transform_indices = @transform_3, window_bounds = array<i64: 8, 2, 10>}, {transform_indices = @transform_4, window_bounds = array<i64: 8, 8, 32>}, {pipeline_mode = #tpu.pipeline_mode<synchronous>, transform_indices = @transform_5, window_bounds = array<i64: 32, 16>}, {pipeline_mode = #tpu.pipeline_mode<synchronous>, transform_indices = @transform_6, window_bounds = array<i64: 6, 16>}, {pipeline_mode = #tpu.pipeline_mode<synchronous>, transform_indices = @transform_7, window_bounds = array<i64: 1, 16>}, {transform_indices = @transform_8, window_bounds = array<i64: 8, 32>}, {transform_indices = @transform_9, window_bounds = array<i64: 8, 8>}]} {
    %c0 = arith.constant 0 : index
    %c0_0 = arith.constant 0 : index
    %0 = vector.load %arg2[%c0, %c0_0] : memref<8x32xbf16, #tpu.memory_space<vmem>>, vector<8x32xbf16>
    %c0_1 = arith.constant 0 : index
    %c0_2 = arith.constant 0 : index
    %1 = vector.load %arg6[%c0_1, %c0_2] : memref<32x16xbf16, #tpu.memory_space<vmem>>, vector<32x16xbf16>
    %cst = arith.constant dense<0.000000e+00> : vector<8x16xf32>
    %2 = tpu.matmul %0, %1, %cst {dimension_numbers = #tpu.dot_dimension_numbers<[1], [0], [0], [1], [0, 0, 1, 1], [], []>} : vector<8x32xbf16>, vector<32x16xbf16>, vector<8x16xf32> -> vector<8x16xf32>
    %c0_3 = arith.constant 0 : index
    %c0_4 = arith.constant 0 : index
    %c0_5 = arith.constant 0 : index
    %3 = vector.load %arg4[%c0_3, %c0_4, %c0_5] : memref<8x2x10xf32, #tpu.memory_space<vmem>>, vector<8x2x10xf32>
    %4 = vector.extract_strided_slice %3 {offsets = [0, 0, 0], sizes = [8, 1, 8], strides = [1, 1, 1]} : vector<8x2x10xf32> to vector<8x1x8xf32>
    %5 = vector.shape_cast %4 : vector<8x1x8xf32> to vector<8x8xf32>
    %6 = vector.extract_strided_slice %3 {offsets = [0, 0, 1], sizes = [8, 1, 8], strides = [1, 1, 1]} : vector<8x2x10xf32> to vector<8x1x8xf32>
    %7 = vector.shape_cast %6 : vector<8x1x8xf32> to vector<8x8xf32>
    %8 = vector.extract_strided_slice %3 {offsets = [0, 0, 2], sizes = [8, 1, 8], strides = [1, 1, 1]} : vector<8x2x10xf32> to vector<8x1x8xf32>
    %9 = vector.shape_cast %8 : vector<8x1x8xf32> to vector<8x8xf32>
    %10 = vector.extract_strided_slice %3 {offsets = [0, 1, 0], sizes = [8, 1, 8], strides = [1, 1, 1]} : vector<8x2x10xf32> to vector<8x1x8xf32>
    %11 = vector.shape_cast %10 : vector<8x1x8xf32> to vector<8x8xf32>
    %12 = vector.extract_strided_slice %3 {offsets = [0, 1, 1], sizes = [8, 1, 8], strides = [1, 1, 1]} : vector<8x2x10xf32> to vector<8x1x8xf32>
    %13 = vector.shape_cast %12 : vector<8x1x8xf32> to vector<8x8xf32>
    %14 = vector.extract_strided_slice %3 {offsets = [0, 1, 2], sizes = [8, 1, 8], strides = [1, 1, 1]} : vector<8x2x10xf32> to vector<8x1x8xf32>
    %15 = vector.shape_cast %14 : vector<8x1x8xf32> to vector<8x8xf32>
    %16 = vector.shape_cast %5 : vector<8x8xf32> to vector<8x8x1xf32>
    %17 = vector.shape_cast %7 : vector<8x8xf32> to vector<8x8x1xf32>
    %18 = vector.shape_cast %9 : vector<8x8xf32> to vector<8x8x1xf32>
    %19 = vector.shape_cast %11 : vector<8x8xf32> to vector<8x8x1xf32>
    %20 = vector.shape_cast %13 : vector<8x8xf32> to vector<8x8x1xf32>
    %21 = vector.shape_cast %15 : vector<8x8xf32> to vector<8x8x1xf32>
    %22 = tpu.concatenate %16, %17, %18, %19, %20, %21 in 2 : vector<8x8x1xf32>, vector<8x8x1xf32>, vector<8x8x1xf32>, vector<8x8x1xf32>, vector<8x8x1xf32>, vector<8x8x1xf32> -> vector<8x8x6xf32>
    %23 = vector.shape_cast %22 : vector<8x8x6xf32> to vector<64x6xf32>
    %c0_6 = arith.constant 0 : index
    %c0_7 = arith.constant 0 : index
    %24 = vector.load %arg7[%c0_6, %c0_7] : memref<6x16xf32, #tpu.memory_space<vmem>>, vector<6x16xf32>
    %cst_8 = arith.constant dense<0.000000e+00> : vector<64x16xf32>
    %25 = tpu.matmul %23, %24, %cst_8 {dimension_numbers = #tpu.dot_dimension_numbers<[1], [0], [0], [1], [0, 0, 1, 1], [], []>} : vector<64x6xf32>, vector<6x16xf32>, vector<64x16xf32> -> vector<64x16xf32>
    %26 = vector.shape_cast %25 : vector<64x16xf32> to vector<8x8x16xf32>
    %27 = vector.shape_cast %2 : vector<8x16xf32> to vector<8x1x16xf32>
    %28 = vector.broadcast %27 : vector<8x1x16xf32> to vector<8x8x16xf32>
    %29 = arith.addf %28, %26 : vector<8x8x16xf32>
    %c0_9 = arith.constant 0 : index
    %c0_10 = arith.constant 0 : index
    %c0_11 = arith.constant 0 : index
    %30 = vector.load %arg3[%c0_9, %c0_10, %c0_11] : memref<8x8x16xbf16, #tpu.memory_space<vmem>>, vector<8x8x16xbf16>
    %31 = arith.extf %30 : vector<8x8x16xbf16> to vector<8x8x16xf32>
    %32 = arith.addf %29, %31 : vector<8x8x16xf32>
    %33 = math.tanh %32 : vector<8x8x16xf32>
    %c0_12 = arith.constant 0 : index
    %c0_13 = arith.constant 0 : index
    %34 = vector.load %arg8[%c0_12, %c0_13] : memref<1x16xf32, #tpu.memory_space<vmem>>, vector<1x16xf32>
    %35 = vector.shape_cast %34 : vector<1x16xf32> to vector<1x1x16xf32>
    %36 = vector.broadcast %35 : vector<1x1x16xf32> to vector<8x8x16xf32>
    %37 = arith.mulf %33, %36 : vector<8x8x16xf32>
    %cst_14 = arith.constant dense<0.000000e+00> : vector<8x8xf32>
    %38 = vector.multi_reduction <add>, %37, %cst_14 [2] : vector<8x8x16xf32> to vector<8x8xf32>
    %c0_15 = arith.constant 0 : index
    %c0_16 = arith.constant 0 : index
    %39 = vector.load %arg1[%c0_15, %c0_16] : memref<8x8xi32, #tpu.memory_space<vmem>>, vector<8x8xi32>
    %c0_i32 = arith.constant 0 : i32
    %40 = vector.broadcast %c0_i32 : i32 to vector<8x8xi32>
    %41 = arith.cmpi ne, %39, %40 : vector<8x8xi32>
    %cst_17 = arith.constant 0xFF800000 : f32
    %42 = vector.broadcast %cst_17 : f32 to vector<8x8xf32>
    %43 = arith.select %41, %42, %38 : vector<8x8xi1>, vector<8x8xf32>
    %cst_18 = arith.constant dense<0xFF800000> : vector<8xf32>
    %44 = vector.multi_reduction <maximumf>, %43, %cst_18 [1] : vector<8x8xf32> to vector<8xf32>
    %45 = vector.shape_cast %44 : vector<8xf32> to vector<8x1xf32>
    %46 = vector.broadcast %45 : vector<8x1xf32> to vector<8x8xf32>
    %47 = arith.subf %43, %46 : vector<8x8xf32>
    %48 = math.exp %47 : vector<8x8xf32>
    %cst_19 = arith.constant dense<0.000000e+00> : vector<8xf32>
    %49 = vector.multi_reduction <add>, %48, %cst_19 [1] : vector<8x8xf32> to vector<8xf32>
    %50 = vector.shape_cast %49 : vector<8xf32> to vector<8x1xf32>
    %51 = tpu.reciprocal %50 {approx = true} : vector<8x1xf32> -> vector<8x1xf32>
    %52 = vector.broadcast %51 : vector<8x1xf32> to vector<8x8xf32>
    %53 = arith.mulf %48, %52 : vector<8x8xf32>
    %54 = arith.truncf %53 : vector<8x8xf32> to vector<8x8xbf16>
    %55 = vector.shape_cast %54 : vector<8x8xbf16> to vector<8x1x8xbf16>
    %c0_20 = arith.constant 0 : index
    %c0_21 = arith.constant 0 : index
    %c0_22 = arith.constant 0 : index
    %56 = vector.load %arg5[%c0_20, %c0_21, %c0_22] : memref<8x8x32xbf16, #tpu.memory_space<vmem>>, vector<8x8x32xbf16>
    "tpu.trace_start"() <{level = 10 : i32, message = "bqt,bte->bqe"}> : () -> ()
    %cst_23 = arith.constant dense<0.000000e+00> : vector<8x1x32xf32>
    %57 = tpu.matmul %55, %56, %cst_23 {dimension_numbers = #tpu.dot_dimension_numbers<[2], [1], [1], [2], [0, 0, 0, 1, 1, 2], [0], [0]>} : vector<8x1x8xbf16>, vector<8x8x32xbf16>, vector<8x1x32xf32> -> vector<8x1x32xf32>
    "tpu.trace_stop"() : () -> ()
    %58 = vector.shape_cast %57 : vector<8x1x32xf32> to vector<8x32xf32>
    %c0_24 = arith.constant 0 : index
    %c0_25 = arith.constant 0 : index
    %59 = vector.load %arg9[%c0_24, %c0_25] : memref<8x32xf32, #tpu.memory_space<vmem>>, vector<8x32xf32>
    tpu.vector_store %arg9[%c0_24, %c0_25], %58 {strides = array<i32>} : memref<8x32xf32, #tpu.memory_space<vmem>>, vector<8x32xf32>,
    %c0_26 = arith.constant 0 : index
    %c0_27 = arith.constant 0 : index
    %60 = vector.load %arg10[%c0_26, %c0_27] : memref<8x8xf32, #tpu.memory_space<vmem>>, vector<8x8xf32>
    tpu.vector_store %arg10[%c0_26, %c0_27], %53 {strides = array<i32>} : memref<8x8xf32, #tpu.memory_space<vmem>>, vector<8x8xf32>,
    return
  }
  func.func @transform_0(%arg0: i32) -> (i32, i32) {
    %c0_i32 = arith.constant 0 : i32
    %c0_i32_0 = arith.constant 0 : i32
    return %arg0, %c0_i32 : i32, i32
  }
  func.func @transform_1(%arg0: i32) -> (i32, i32) {
    %c0_i32 = arith.constant 0 : i32
    %c0_i32_0 = arith.constant 0 : i32
    return %arg0, %c0_i32 : i32, i32
  }
  func.func @transform_2(%arg0: i32) -> (i32, i32, i32) {
    %c0_i32 = arith.constant 0 : i32
    %c0_i32_0 = arith.constant 0 : i32
    %c0_i32_1 = arith.constant 0 : i32
    return %arg0, %c0_i32, %c0_i32_0 : i32, i32, i32
  }
  func.func @transform_3(%arg0: i32) -> (i32, i32, i32) {
    %c0_i32 = arith.constant 0 : i32
    %c0_i32_0 = arith.constant 0 : i32
    %c0_i32_1 = arith.constant 0 : i32
    return %arg0, %c0_i32, %c0_i32_0 : i32, i32, i32
  }
  func.func @transform_4(%arg0: i32) -> (i32, i32, i32) {
    %c0_i32 = arith.constant 0 : i32
    %c0_i32_0 = arith.constant 0 : i32
    %c0_i32_1 = arith.constant 0 : i32
    return %arg0, %c0_i32, %c0_i32_0 : i32, i32, i32
  }
  func.func @transform_5(%arg0: i32) -> (i32, i32) {
    %c0_i32 = arith.constant 0 : i32
    %c0_i32_0 = arith.constant 0 : i32
    %c0_i32_1 = arith.constant 0 : i32
    return %c0_i32, %c0_i32_0 : i32, i32
  }
  func.func @transform_6(%arg0: i32) -> (i32, i32) {
    %c0_i32 = arith.constant 0 : i32
    %c0_i32_0 = arith.constant 0 : i32
    %c0_i32_1 = arith.constant 0 : i32
    return %c0_i32, %c0_i32_0 : i32, i32
  }
  func.func @transform_7(%arg0: i32) -> (i32, i32) {
    %c0_i32 = arith.constant 0 : i32
    %c0_i32_0 = arith.constant 0 : i32
    %c0_i32_1 = arith.constant 0 : i32
    return %c0_i32, %c0_i32_0 : i32, i32
  }
  func.func @transform_8(%arg0: i32) -> (i32, i32) {
    %c0_i32 = arith.constant 0 : i32
    %c0_i32_0 = arith.constant 0 : i32
    return %arg0, %c0_i32 : i32, i32
  }
  func.func @transform_9(%arg0: i32) -> (i32, i32) {
    %c0_i32 = arith.constant 0 : i32
    %c0_i32_0 = arith.constant 0 : i32
    return %arg0, %c0_i32 : i32, i32
  }
}

</mosaic_0001>

<llo_original>
// kernel: tpu_custom_call.1
$region0: #{tpu_custom_call.1}
  #allocation0 [shape = 'u32[]', space=smem, size = 0x4, offset = 0x4, fixed_abs, tag = 'smem constant byte address 0x4 - core index']
  #allocation1 [shape = 'u32[144,128]{1,0:T(1,128)}', space=vmem, size = 0x12000, scoped, tag = 'internal scratch']
  %s0 = inlined_call_operand.vmem [shape: s32[8,8], index: 0, kind: input, shape index: {}]
  %s1 = inlined_call_operand.hbm [shape: bf16[8,32], index: 1, kind: input, shape index: {}]
  %s2 = inlined_call_operand.hbm [shape: bf16[8,8,16], index: 2, kind: input, shape index: {}]
  %s3 = inlined_call_operand.vmem [shape: f32[8,2,10], index: 3, kind: input, shape index: {}]
  %s4 = inlined_call_operand.hbm [shape: bf16[8,8,32], index: 4, kind: input, shape index: {}]
  %s5 = inlined_call_operand.vmem [shape: bf16[32,16], index: 5, kind: input, shape index: {}]
  %s6 = inlined_call_operand.hbm [shape: f32[6,16], index: 6, kind: input, shape index: {}]
  %s7 = inlined_call_operand.vmem [shape: f32[1,16], index: 7, kind: input, shape index: {}]
  %s8 = inlined_call_operand.hbm [shape: f32[8,32], index: 8, kind: output, shape index: {0}]
  %s9 = inlined_call_operand.hbm [shape: f32[8,8], index: 9, kind: output, shape index: {1}]
  %10 = xla_tuple %s8, %s9
  %s11 = sld [smem:[#allocation0]]
  $region66: #{tpu_custom_call.1} parent=0
    _
  %s13 = ssub.s32 1, %s11
  %s14 = scalar_select 0, %s13, %s11
  $region1: #{tpu_custom_call.1} parent=0
    #allocation2 [shape = 'u8[2048]{0}', space=vmem, size = 0x800, scoped, tag = 'input window, operand 1, single buffered']
    #allocation3 [shape = 's32[1]{0}', space=sflag, size = 0x4, scoped, tag = 'scoped memory for tpu_custom_call.1']
    #allocation4 [shape = 's32[1]{0}', space=sflag, size = 0x4, scoped, tag = 'scoped memory for tpu_custom_call.1']
    #allocation5 [shape = 'u8[16384]{0}', space=vmem, size = 0x4000, scoped, tag = 'input window, operand 2, single buffered']
    #allocation6 [shape = 's32[1]{0}', space=sflag, size = 0x4, scoped, tag = 'scoped memory for tpu_custom_call.1']
    #allocation7 [shape = 'u8[16384]{0}', space=vmem, size = 0x4000, scoped, tag = 'input window, operand 4, single buffered']
    #allocation8 [shape = 'u8[4096]{0}', space=vmem, size = 0x1000, scoped, tag = 'input window, operand 6, single buffered']
    #allocation9 [shape = 's32[1]{0}', space=sflag, size = 0x4, scoped, tag = 'scoped memory for tpu_custom_call.1']
    #allocation10 [shape = 'u8[4096]{0}', space=vmem, size = 0x1000, scoped, tag = 'output window, operand 0, single buffered']
    #allocation11 [shape = 'u8[4096]{0}', space=vmem, size = 0x1000, scoped, tag = 'output window, operand 1, single buffered']
    #allocation12 [shape = 's32[1]{0}', space=sflag, size = 0x4, scoped, tag = 'scoped memory for tpu_custom_call.1']
    %15 = vsyncpa [#allocation3], 0
    %16 = vsyncpa [#allocation6], 0
    %17 = vsyncpa [#allocation9], 0
    %18 = vsyncpa [#allocation4], 0
    %19 = vsyncpa [#allocation12], 0
    // Predicated region
    $region2: #{tpu_custom_call.1} parent=1 // pred_check
      _
    $region3: #{tpu_custom_call.1} parent=1 // pred_check_branch
      %21 = sbr.rel (0) target = $region5
    $region4: #{tpu_custom_call.1} parent=1 // pred_region
      _
    $region5: #{tpu_custom_call.1} parent=1 // pred_fallthru
      _
    // Predicated region
    $region6: #{tpu_custom_call.1} parent=1 // pred_check
      _
    $region7: #{tpu_custom_call.1} parent=1 // pred_check_branch
      %23 = sbr.rel (0) target = $region9
    $region8: #{tpu_custom_call.1} parent=1 // pred_region
      %s25 = ssub.s32 64, 64
      %26 = vsyncadd [#allocation3], %s25
      %s28 = sshll.u32 [#allocation2], 4
      %s29 = int_to_ptr.vmem [resolvable:$true] %s28
      %31 = dma.hbm_to_vmem [thread:$0]  %s1, 64, %s29, [#allocation3]
    $region9: #{tpu_custom_call.1} parent=1 // pred_fallthru
      _
    // Predicated region
    $region10: #{tpu_custom_call.1} parent=1 // pred_check
      _
    $region11: #{tpu_custom_call.1} parent=1 // pred_check_branch
      %33 = sbr.rel (0) target = $region13
    $region12: #{tpu_custom_call.1} parent=1 // pred_region
      %s35 = ssub.s32 512, 512
      %36 = vsyncadd [#allocation6], %s35
      %s37 = sshll.u32 [#allocation5], 4
      %s38 = int_to_ptr.vmem [resolvable:$true] %s37
      %43 = dma.hbm_to_vmem [thread:$0]  %s2, 512, %s38, [#allocation6], 64, 64, 4
    $region13: #{tpu_custom_call.1} parent=1 // pred_fallthru
      _
    // Predicated region
    $region14: #{tpu_custom_call.1} parent=1 // pred_check
      _
    $region15: #{tpu_custom_call.1} parent=1 // pred_check_branch
      %45 = sbr.rel (0) target = $region17
    $region16: #{tpu_custom_call.1} parent=1 // pred_region
      _
    $region17: #{tpu_custom_call.1} parent=1 // pred_fallthru
      _
    // Predicated region
    $region18: #{tpu_custom_call.1} parent=1 // pred_check
      _
    $region19: #{tpu_custom_call.1} parent=1 // pred_check_branch
      %47 = sbr.rel (0) target = $region21
    $region20: #{tpu_custom_call.1} parent=1 // pred_region
      %s49 = ssub.s32 512, 512
      %50 = vsyncadd [#allocation6], %s49
      %s51 = sshll.u32 [#allocation7], 4
      %s52 = int_to_ptr.vmem [resolvable:$true] %s51
      %57 = dma.hbm_to_vmem [thread:$0]  %s4, 512, %s52, [#allocation6], 64, 64, 4
    $region21: #{tpu_custom_call.1} parent=1 // pred_fallthru
      _
    // Predicated region
    $region22: #{tpu_custom_call.1} parent=1 // pred_check
      _
    $region23: #{tpu_custom_call.1} parent=1 // pred_check_branch
      %59 = sbr.rel (0) target = $region25
    $region24: #{tpu_custom_call.1} parent=1 // pred_region
      _
    $region25: #{tpu_custom_call.1} parent=1 // pred_fallthru
      _
    // Predicated region
    $region26: #{tpu_custom_call.1} parent=1 // pred_check
      _
    $region27: #{tpu_custom_call.1} parent=1 // pred_check_branch
      %61 = sbr.rel (0) target = $region29
    $region28: #{tpu_custom_call.1} parent=1 // pred_region
      %s63 = ssub.s32 128, 128
      %64 = vsyncadd [#allocation9], %s63
      %s66 = sshll.u32 [#allocation8], 4
      %s67 = int_to_ptr.vmem [resolvable:$true] %s66
      %69 = dma.hbm_to_vmem [thread:$0]  %s6, 128, %s67, [#allocation9]
    $region29: #{tpu_custom_call.1} parent=1 // pred_fallthru
      _
    // Predicated region
    $region30: #{tpu_custom_call.1} parent=1 // pred_check
      _
    $region31: #{tpu_custom_call.1} parent=1 // pred_check_branch
      %71 = sbr.rel (0) target = $region33
    $region32: #{tpu_custom_call.1} parent=1 // pred_region
      _
    $region33: #{tpu_custom_call.1} parent=1 // pred_fallthru
      _
    // Predicated region
    $region34: #{tpu_custom_call.1} parent=1 // pred_check
      _
    $region35: #{tpu_custom_call.1} parent=1 // pred_check_branch
      %73 = sbr.rel (0) target = $region37
    $region36: #{tpu_custom_call.1} parent=1 // pred_region
      %74 = dma.done [#allocation3], 64
    $region37: #{tpu_custom_call.1} parent=1 // pred_fallthru
      _
    // Predicated region
    $region38: #{tpu_custom_call.1} parent=1 // pred_check
      _
    $region39: #{tpu_custom_call.1} parent=1 // pred_check_branch
      %76 = sbr.rel (0) target = $region41
    $region40: #{tpu_custom_call.1} parent=1 // pred_region
      %77 = dma.done [#allocation6], 512
    $region41: #{tpu_custom_call.1} parent=1 // pred_fallthru
      _
    // Predicated region
    $region42: #{tpu_custom_call.1} parent=1 // pred_check
      _
    $region43: #{tpu_custom_call.1} parent=1 // pred_check_branch
      %79 = sbr.rel (0) target = $region45
    $region44: #{tpu_custom_call.1} parent=1 // pred_region
      %80 = dma.done [#allocation6], 512
    $region45: #{tpu_custom_call.1} parent=1 // pred_fallthru
      _
    // Predicated region
    $region46: #{tpu_custom_call.1} parent=1 // pred_check
      _
    $region47: #{tpu_custom_call.1} parent=1 // pred_check_branch
      %82 = sbr.rel (0) target = $region49
    $region48: #{tpu_custom_call.1} parent=1 // pred_region
      %83 = dma.done [#allocation9], 128
    $region49: #{tpu_custom_call.1} parent=1 // pred_fallthru
      _
    %v85 = vld [vmem:[#allocation2] sm:$0xf]
    %v86 = vld [vmem:[%s5] sm:$0xf]
    %v87 = vld [vmem:[%s5 + $0x4] sm:$0xf]
    %v88 = vld [vmem:[%s5 + $0x8] sm:$0xf]
    %v89 = vld [vmem:[%s5 + $0xc] sm:$0xf]
    %v94 = vunpack.c.l.b16 %v86
    %v95 = vunpack.c.l.b16 %v87
    %v96 = vunpack.c.l.b16 %v88
    %v97 = vunpack.c.l.b16 %v89
    %v98 = vpack.c.b16 %v95, %v94
    %v99 = vpack.c.b16 %v97, %v96
    %vm102 = vcmask 261120
    %v104 = vsel %vm102, %v85, 0
    %106 = vmatprep.subr.bf16.mxu0 0
    %107 = vmatpush1.bf16.msra.mxu0 0
    %108 = vmatprep.subr.bf16.mxu0 0
    %109 = vmatpush1.bf16.msra.mxu0 0
    %110 = vmatprep.subr.bf16.mxu0 0
    %111 = vmatpush1.bf16.msra.mxu0 0
    %112 = vmatprep.subr.bf16.mxu0 0
    %113 = vmatpush1.bf16.msra.mxu0 0
    %114 = vmatprep.subr.bf16.mxu0 0
    %115 = vmatpush1.bf16.msra.mxu0 0
    %116 = vmatprep.subr.bf16.mxu0 0
    %117 = vmatpush1.bf16.msra.mxu0 0
    %118 = vmatprep.subr.bf16.mxu0 0
    %119 = vmatpush1.bf16.msra.mxu0 %v99
    %120 = vmatprep.subr.bf16.mxu0 0
    %121 = vmatpush1.bf16.msra.mxu0 %v98
    %122 = vmatprep.subr.bf16.mxu0 0
    %123 = vmatpush2.bf16.msra.mxu0 0
    %124 = vmatprep.subr.bf16.mxu0 0
    %125 = vmatpush2.bf16.msra.mxu0 0
    %126 = vmatprep.subr.bf16.mxu0 0
    %127 = vmatpush2.bf16.msra.mxu0 0
    %128 = vmatprep.subr.bf16.mxu0 0
    %129 = vmatpush2.bf16.msra.mxu0 0
    %130 = vmatprep.subr.bf16.mxu0 0
    %131 = vmatpush2.bf16.msra.mxu0 0
    %132 = vmatprep.subr.bf16.mxu0 0
    %133 = vmatpush2.bf16.msra.mxu0 0
    %134 = vmatprep.subr.bf16.mxu0 0
    %135 = vmatpush2.bf16.msra.mxu0 0
    %136 = vmatprep.subr.bf16.mxu0 0
    %137 = vmatpush2.bf16.msra.mxu0 0
    %138 = vmatprep.mubr.bf16.mxu0 0
    %139 = vmatmul.mubr.bf16.gmra.mxu0 %v104
    %v140 = vpop.f32.mrf.mxu0
    %v141 = vadd.f32 0.0, %v140
    %v142 = vpop.f32.mrf.mxu0
    %v143 = vpop.f32.mrf.mxu0
    %v144 = vpop.f32.mrf.mxu0
    %145 = vdwg.mxu0
    %v146 = vld [vmem:[%s3] sm:$0x3]
    %v147 = vld [vmem:[%s3 + $0x2] sm:$0x3]
    %v148 = vld [vmem:[%s3 + $0x4] sm:$0x3]
    %v149 = vld [vmem:[%s3 + $0x6] sm:$0x3]
    %v150 = vld [vmem:[%s3 + $0x8] sm:$0x3]
    %v151 = vld [vmem:[%s3 + $0xa] sm:$0x3]
    %v152 = vld [vmem:[%s3 + $0xc] sm:$0x3]
    %v153 = vld [vmem:[%s3 + $0xe] sm:$0x3]
    %v154 = vlaneseq
    %v155 = vshrl.u32 %v154, 7
    %v156 = vsub.s32 0, %v155
    %v157 = vrot.slane %v146, %v156
    %159 = vbcast.lane.b32.xlu0 %v157, 256
    %v160 = vpop.permute.xlu0 %159
    %v161 = vlaneseq
    %v162 = vshrl.u32 %v161, 7
    %v163 = vsub.s32 0, %v162
    %v164 = vrot.slane %v147, %v163
    %166 = vbcast.lane.b32.xlu0 %v164, 256
    %v167 = vpop.permute.xlu0 %166
    %v168 = vlaneseq
    %v169 = vshrl.u32 %v168, 7
    %v170 = vsub.s32 0, %v169
    %v171 = vrot.slane %v148, %v170
    %173 = vbcast.lane.b32.xlu0 %v171, 256
    %v174 = vpop.permute.xlu0 %173
    %v175 = vlaneseq
    %v176 = vshrl.u32 %v175, 7
    %v177 = vsub.s32 0, %v176
    %v178 = vrot.slane %v149, %v177
    %180 = vbcast.lane.b32.xlu0 %v178, 256
    %v181 = vpop.permute.xlu0 %180
    %v182 = vlaneseq
    %v183 = vshrl.u32 %v182, 7
    %v184 = vsub.s32 0, %v183
    %v185 = vrot.slane %v150, %v184
    %187 = vbcast.lane.b32.xlu0 %v185, 256
    %v188 = vpop.permute.xlu0 %187
    %v189 = vlaneseq
    %v190 = vshrl.u32 %v189, 7
    %v191 = vsub.s32 0, %v190
    %v192 = vrot.slane %v151, %v191
    %194 = vbcast.lane.b32.xlu0 %v192, 256
    %v195 = vpop.permute.xlu0 %194
    %v196 = vlaneseq
    %v197 = vshrl.u32 %v196, 7
    %v198 = vsub.s32 0, %v197
    %v199 = vrot.slane %v152, %v198
    %201 = vbcast.lane.b32.xlu0 %v199, 256
    %v202 = vpop.permute.xlu0 %201
    %v203 = vlaneseq
    %v204 = vshrl.u32 %v203, 7
    %v205 = vsub.s32 0, %v204
    %v206 = vrot.slane %v153, %v205
    %208 = vbcast.lane.b32.xlu0 %v206, 256
    %v209 = vpop.permute.xlu0 %208
    %s211 = sor.u32 256, 1
    %212 = vbcast.lane.b32.xlu0 %v157, %s211
    %v213 = vpop.permute.xlu0 %212
    %s215 = sor.u32 256, 1
    %216 = vbcast.lane.b32.xlu0 %v164, %s215
    %v217 = vpop.permute.xlu0 %216
    %s219 = sor.u32 256, 1
    %220 = vbcast.lane.b32.xlu0 %v171, %s219
    %v221 = vpop.permute.xlu0 %220
    %s223 = sor.u32 256, 1
    %224 = vbcast.lane.b32.xlu0 %v178, %s223
    %v225 = vpop.permute.xlu0 %224
    %s227 = sor.u32 256, 1
    %228 = vbcast.lane.b32.xlu0 %v185, %s227
    %v229 = vpop.permute.xlu0 %228
    %s231 = sor.u32 256, 1
    %232 = vbcast.lane.b32.xlu0 %v192, %s231
    %v233 = vpop.permute.xlu0 %232
    %s235 = sor.u32 256, 1
    %236 = vbcast.lane.b32.xlu0 %v199, %s235
    %v237 = vpop.permute.xlu0 %236
    %s239 = sor.u32 256, 1
    %240 = vbcast.lane.b32.xlu0 %v206, %s239
    %v241 = vpop.permute.xlu0 %240
    %s243 = sor.u32 256, 2
    %244 = vbcast.lane.b32.xlu0 %v157, %s243
    %v245 = vpop.permute.xlu0 %244
    %s247 = sor.u32 256, 2
    %248 = vbcast.lane.b32.xlu0 %v164, %s247
    %v249 = vpop.permute.xlu0 %248
    %s251 = sor.u32 256, 2
    %252 = vbcast.lane.b32.xlu0 %v171, %s251
    %v253 = vpop.permute.xlu0 %252
    %s255 = sor.u32 256, 2
    %256 = vbcast.lane.b32.xlu0 %v178, %s255
    %v257 = vpop.permute.xlu0 %256
    %s259 = sor.u32 256, 2
    %260 = vbcast.lane.b32.xlu0 %v185, %s259
    %v261 = vpop.permute.xlu0 %260
    %s263 = sor.u32 256, 2
    %264 = vbcast.lane.b32.xlu0 %v192, %s263
    %v265 = vpop.permute.xlu0 %264
    %s267 = sor.u32 256, 2
    %268 = vbcast.lane.b32.xlu0 %v199, %s267
    %v269 = vpop.permute.xlu0 %268
    %s271 = sor.u32 256, 2
    %272 = vbcast.lane.b32.xlu0 %v206, %s271
    %v273 = vpop.permute.xlu0 %272
    %v274 = vlaneseq
    %v275 = vshrl.u32 %v274, 7
    %v276 = vsub.s32 1, %v275
    %v277 = vrot.slane %v146, %v276
    %279 = vbcast.lane.b32.xlu0 %v277, 256
    %v280 = vpop.permute.xlu0 %279
    %v281 = vlaneseq
    %v282 = vshrl.u32 %v281, 7
    %v283 = vsub.s32 1, %v282
    %v284 = vrot.slane %v147, %v283
    %286 = vbcast.lane.b32.xlu0 %v284, 256
    %v287 = vpop.permute.xlu0 %286
    %v288 = vlaneseq
    %v289 = vshrl.u32 %v288, 7
    %v290 = vsub.s32 1, %v289
    %v291 = vrot.slane %v148, %v290
    %293 = vbcast.lane.b32.xlu0 %v291, 256
    %v294 = vpop.permute.xlu0 %293
    %v295 = vlaneseq
    %v296 = vshrl.u32 %v295, 7
    %v297 = vsub.s32 1, %v296
    %v298 = vrot.slane %v149, %v297
    %300 = vbcast.lane.b32.xlu0 %v298, 256
    %v301 = vpop.permute.xlu0 %300
    %v302 = vlaneseq
    %v303 = vshrl.u32 %v302, 7
    %v304 = vsub.s32 1, %v303
    %v305 = vrot.slane %v150, %v304
    %307 = vbcast.lane.b32.xlu0 %v305, 256
    %v308 = vpop.permute.xlu0 %307
    %v309 = vlaneseq
    %v310 = vshrl.u32 %v309, 7
    %v311 = vsub.s32 1, %v310
    %v312 = vrot.slane %v151, %v311
    %314 = vbcast.lane.b32.xlu0 %v312, 256
    %v315 = vpop.permute.xlu0 %314
    %v316 = vlaneseq
    %v317 = vshrl.u32 %v316, 7
    %v318 = vsub.s32 1, %v317
    %v319 = vrot.slane %v152, %v318
    %321 = vbcast.lane.b32.xlu0 %v319, 256
    %v322 = vpop.permute.xlu0 %321
    %v323 = vlaneseq
    %v324 = vshrl.u32 %v323, 7
    %v325 = vsub.s32 1, %v324
    %v326 = vrot.slane %v153, %v325
    %328 = vbcast.lane.b32.xlu0 %v326, 256
    %v329 = vpop.permute.xlu0 %328
    %s331 = sor.u32 256, 1
    %332 = vbcast.lane.b32.xlu0 %v277, %s331
    %v333 = vpop.permute.xlu0 %332
    %s335 = sor.u32 256, 1
    %336 = vbcast.lane.b32.xlu0 %v284, %s335
    %v337 = vpop.permute.xlu0 %336
    %s339 = sor.u32 256, 1
    %340 = vbcast.lane.b32.xlu0 %v291, %s339
    %v341 = vpop.permute.xlu0 %340
    %s343 = sor.u32 256, 1
    %344 = vbcast.lane.b32.xlu0 %v298, %s343
    %v345 = vpop.permute.xlu0 %344
    %s347 = sor.u32 256, 1
    %348 = vbcast.lane.b32.xlu0 %v305, %s347
    %v349 = vpop.permute.xlu0 %348
    %s351 = sor.u32 256, 1
    %352 = vbcast.lane.b32.xlu0 %v312, %s351
    %v353 = vpop.permute.xlu0 %352
    %s355 = sor.u32 256, 1
    %356 = vbcast.lane.b32.xlu0 %v319, %s355
    %v357 = vpop.permute.xlu0 %356
    %s359 = sor.u32 256, 1
    %360 = vbcast.lane.b32.xlu0 %v326, %s359
    %v361 = vpop.permute.xlu0 %360
    %s363 = sor.u32 256, 2
    %364 = vbcast.lane.b32.xlu0 %v277, %s363
    %v365 = vpop.permute.xlu0 %364
    %s367 = sor.u32 256, 2
    %368 = vbcast.lane.b32.xlu0 %v284, %s367
    %v369 = vpop.permute.xlu0 %368
    %s371 = sor.u32 256, 2
    %372 = vbcast.lane.b32.xlu0 %v291, %s371
    %v373 = vpop.permute.xlu0 %372
    %s375 = sor.u32 256, 2
    %376 = vbcast.lane.b32.xlu0 %v298, %s375
    %v377 = vpop.permute.xlu0 %376
    %s379 = sor.u32 256, 2
    %380 = vbcast.lane.b32.xlu0 %v305, %s379
    %v381 = vpop.permute.xlu0 %380
    %s383 = sor.u32 256, 2
    %384 = vbcast.lane.b32.xlu0 %v312, %s383
    %v385 = vpop.permute.xlu0 %384
    %s387 = sor.u32 256, 2
    %388 = vbcast.lane.b32.xlu0 %v319, %s387
    %v389 = vpop.permute.xlu0 %388
    %s391 = sor.u32 256, 2
    %392 = vbcast.lane.b32.xlu0 %v326, %s391
    %v393 = vpop.permute.xlu0 %392
    %vm394 = vcmask 7168
    %v395 = vsel %vm394, %v160, %v213
    %v396 = vsel %vm394, %v167, %v217
    %v397 = vsel %vm394, %v174, %v221
    %v398 = vsel %vm394, %v181, %v225
    %v399 = vsel %vm394, %v188, %v229
    %v400 = vsel %vm394, %v195, %v233
    %v401 = vsel %vm394, %v202, %v237
    %v402 = vsel %vm394, %v209, %v241
    %vm403 = vcmask 15360
    %v404 = vsel %vm403, %v395, %v245
    %v405 = vsel %vm403, %v396, %v249
    %v406 = vsel %vm403, %v397, %v253
    %v407 = vsel %vm403, %v398, %v257
    %v408 = vsel %vm403, %v399, %v261
    %v409 = vsel %vm403, %v400, %v265
    %v410 = vsel %vm403, %v401, %v269
    %v411 = vsel %vm403, %v402, %v273
    %vm412 = vcmask 23552
    %v413 = vsel %vm412, %v404, %v280
    %v414 = vsel %vm412, %v405, %v287
    %v415 = vsel %vm412, %v406, %v294
    %v416 = vsel %vm412, %v407, %v301
    %v417 = vsel %vm412, %v408, %v308
    %v418 = vsel %vm412, %v409, %v315
    %v419 = vsel %vm412, %v410, %v322
    %v420 = vsel %vm412, %v411, %v329
    %vm421 = vcmask 31744
    %v422 = vsel %vm421, %v413, %v333
    %v423 = vsel %vm421, %v414, %v337
    %v424 = vsel %vm421, %v415, %v341
    %v425 = vsel %vm421, %v416, %v345
    %v426 = vsel %vm421, %v417, %v349
    %v427 = vsel %vm421, %v418, %v353
    %v428 = vsel %vm421, %v419, %v357
    %v429 = vsel %vm421, %v420, %v361
    %vm430 = vcmask 39936
    %v431 = vsel %vm430, %v422, %v365
    %v432 = vsel %vm430, %v423, %v369
    %v433 = vsel %vm430, %v424, %v373
    %v434 = vsel %vm430, %v425, %v377
    %v435 = vsel %vm430, %v426, %v381
    %v436 = vsel %vm430, %v427, %v385
    %v437 = vsel %vm430, %v428, %v389
    %v438 = vsel %vm430, %v429, %v393
    %v439 = vld [vmem:[#allocation8] sm:$0x3f]
    %vm440 = vcmask 48128
    %v442 = vsel %vm440, %v431, 0
    %v445 = vsel %vm440, %v432, 0
    %v448 = vsel %vm440, %v433, 0
    %v451 = vsel %vm440, %v434, 0
    %v454 = vsel %vm440, %v435, 0
    %v457 = vsel %vm440, %v436, 0
    %v460 = vsel %vm440, %v437, 0
    %v463 = vsel %vm440, %v438, 0
    %vm465 = vcmask 1045504
    %v467 = vsel %vm465, %v439, 0
    %469 = vmatprep.subr.mxu0 0.0
    %470 = vmatpush1.msra.mxu0 0.0
    %471 = vmatprep.subr.mxu0 0.0
    %472 = vmatpush1.msra.mxu0 0.0
    %473 = vmatprep.subr.mxu0 0.0
    %474 = vmatpush1.msra.mxu0 0.0
    %475 = vmatprep.subr.mxu0 0.0
    %476 = vmatpush1.msra.mxu0 0.0
    %477 = vmatprep.subr.mxu0 0.0
    %478 = vmatpush1.msra.mxu0 0.0
    %479 = vmatprep.subr.mxu0 0.0
    %480 = vmatpush1.msra.mxu0 0.0
    %481 = vmatprep.subr.mxu0 0.0
    %482 = vmatpush1.msra.mxu0 0.0
    %483 = vmatprep.subr.mxu0 0.0
    %484 = vmatpush1.msra.mxu0 0.0
    %485 = vmatprep.subr.mxu0 0.0
    %486 = vmatpush1.msra.mxu0 0.0
    %487 = vmatprep.subr.mxu0 0.0
    %488 = vmatpush1.msra.mxu0 0.0
    %489 = vmatprep.subr.mxu0 0.0
    %490 = vmatpush1.msra.mxu0 0.0
    %491 = vmatprep.subr.mxu0 0.0
    %492 = vmatpush1.msra.mxu0 0.0
    %493 = vmatprep.subr.mxu0 0.0
    %494 = vmatpush1.msra.mxu0 0.0
    %495 = vmatprep.subr.mxu0 0.0
    %496 = vmatpush1.msra.mxu0 0.0
    %497 = vmatprep.subr.mxu0 0.0
    %498 = vmatpush1.msra.mxu0 0.0
    %499 = vmatprep.subr.mxu0 0.0
    %500 = vmatpush1.msra.mxu0 %v467
    %501 = vmatprep.subr.mxu0 0.0
    %502 = vmatpush2.msra.mxu0 0.0
    %503 = vmatprep.subr.mxu0 0.0
    %504 = vmatpush2.msra.mxu0 0.0
    %505 = vmatprep.subr.mxu0 0.0
    %506 = vmatpush2.msra.mxu0 0.0
    %507 = vmatprep.subr.mxu0 0.0
    %508 = vmatpush2.msra.mxu0 0.0
    %509 = vmatprep.subr.mxu0 0.0
    %510 = vmatpush2.msra.mxu0 0.0
    %511 = vmatprep.subr.mxu0 0.0
    %512 = vmatpush2.msra.mxu0 0.0
    %513 = vmatprep.subr.mxu0 0.0
    %514 = vmatpush2.msra.mxu0 0.0
    %515 = vmatprep.subr.mxu0 0.0
    %516 = vmatpush2.msra.mxu0 0.0
    %517 = vmatprep.subr.mxu0 0.0
    %518 = vmatpush2.msra.mxu0 0.0
    %519 = vmatprep.subr.mxu0 0.0
    %520 = vmatpush2.msra.mxu0 0.0
    %521 = vmatprep.subr.mxu0 0.0
    %522 = vmatpush2.msra.mxu0 0.0
    %523 = vmatprep.subr.mxu0 0.0
    %524 = vmatpush2.msra.mxu0 0.0
    %525 = vmatprep.subr.mxu0 0.0
    %526 = vmatpush2.msra.mxu0 0.0
    %527 = vmatprep.subr.mxu0 0.0
    %528 = vmatpush2.msra.mxu0 0.0
    %529 = vmatprep.subr.mxu0 0.0
    %530 = vmatpush2.msra.mxu0 0.0
    %531 = vmatprep.subr.mxu0 0.0
    %532 = vmatpush2.msra.mxu0 0.0
    %533 = vmatprep.mubr.f32.mxu0 0.0
    %534 = vmatmul.mubr.f32.gmra.mxu0 %v442
    %v535 = vpop.f32.mrf.mxu0
    %v536 = vadd.f32 0.0, %v535
    %v537 = vpop.f32.mrf.mxu0
    %538 = vmatprep.mubr.f32.mxu0 0.0
    %539 = vmatmul.mubr.f32.gmra.mxu0 %v445
    %v540 = vpop.f32.mrf.mxu0
    %v541 = vadd.f32 0.0, %v540
    %v542 = vpop.f32.mrf.mxu0
    %543 = vmatprep.mubr.f32.mxu0 0.0
    %544 = vmatmul.mubr.f32.gmra.mxu0 %v448
    %v545 = vpop.f32.mrf.mxu0
    %v546 = vadd.f32 0.0, %v545
    %v547 = vpop.f32.mrf.mxu0
    %548 = vmatprep.mubr.f32.mxu0 0.0
    %549 = vmatmul.mubr.f32.gmra.mxu0 %v451
    %v550 = vpop.f32.mrf.mxu0
    %v551 = vadd.f32 0.0, %v550
    %v552 = vpop.f32.mrf.mxu0
    %553 = vmatprep.mubr.f32.mxu0 0.0
    %554 = vmatmul.mubr.f32.gmra.mxu0 %v454
    %v555 = vpop.f32.mrf.mxu0
    %v556 = vadd.f32 0.0, %v555
    %v557 = vpop.f32.mrf.mxu0
    %558 = vmatprep.mubr.f32.mxu0 0.0
    %559 = vmatmul.mubr.f32.gmra.mxu0 %v457
    %v560 = vpop.f32.mrf.mxu0
    %v561 = vadd.f32 0.0, %v560
    %v562 = vpop.f32.mrf.mxu0
    %563 = vmatprep.mubr.f32.mxu0 0.0
    %564 = vmatmul.mubr.f32.gmra.mxu0 %v460
    %v565 = vpop.f32.mrf.mxu0
    %v566 = vadd.f32 0.0, %v565
    %v567 = vpop.f32.mrf.mxu0
    %568 = vmatprep.mubr.f32.mxu0 0.0
    %569 = vmatmul.mubr.f32.gmra.mxu0 %v463
    %v570 = vpop.f32.mrf.mxu0
    %v571 = vadd.f32 0.0, %v570
    %v572 = vpop.f32.mrf.mxu0
    %573 = vdwg.mxu0
    %v575 = vcombine.high %v141, %v141
    %v577 = vunpack.c.l.s4 1966171168
    %v578 = vunpack.c.0.s8 %v577
    %v579 = vlaneseq
    %v580 = vshrl.u32 %v579, 7
    %v581 = vsub.s32 %v578, %v580
    %v582 = vrot.slane %v141, %v581
    %v584 = vunpack.c.l.s4 1966171168
    %v585 = vunpack.c.0.s8 %v584
    %v586 = vlaneseq
    %v587 = vshrl.u32 %v586, 7
    %v588 = vsub.s32 %v585, %v587
    %v589 = vrot.slane %v575, %v588
    %v590 = vcombine.high %v582, %v582
    %v591 = vcombine.high %v589, %v589
    %v593 = vunpack.c.l.s4 1966171168
    %v594 = vunpack.c.0.s8 %v593
    %v595 = vlaneseq
    %v596 = vshrl.u32 %v595, 7
    %v597 = vsub.s32 %v594, %v596
    %v598 = vrot.slane %v582, %v597
    %v600 = vunpack.c.l.s4 1966171168
    %v601 = vunpack.c.0.s8 %v600
    %v602 = vlaneseq
    %v603 = vshrl.u32 %v602, 7
    %v604 = vsub.s32 %v601, %v603
    %v605 = vrot.slane %v589, %v604
    %v607 = vunpack.c.l.s4 1966171168
    %v608 = vunpack.c.0.s8 %v607
    %v609 = vlaneseq
    %v610 = vshrl.u32 %v609, 7
    %v611 = vsub.s32 %v608, %v610
    %v612 = vrot.slane %v590, %v611
    %v614 = vunpack.c.l.s4 1966171168
    %v615 = vunpack.c.0.s8 %v614
    %v616 = vlaneseq
    %v617 = vshrl.u32 %v616, 7
    %v618 = vsub.s32 %v615, %v617
    %v619 = vrot.slane %v591, %v618
    %v620 = vcombine.high %v598, %v598
    %v621 = vcombine.high %v605, %v605
    %v622 = vcombine.high %v612, %v612
    %v623 = vcombine.high %v619, %v619
    %v624 = vlaneseq
    %v625 = vshrl.u32 %v624, 7
    %v626 = vsub.s32 0, %v625
    %v627 = vrot.slane %v598, %v626
    %v628 = vlaneseq
    %v629 = vshrl.u32 %v628, 7
    %v630 = vsub.s32 0, %v629
    %v631 = vrot.slane %v612, %v630
    %v632 = vlaneseq
    %v633 = vshrl.u32 %v632, 7
    %v634 = vsub.s32 0, %v633
    %v635 = vrot.slane %v620, %v634
    %v636 = vlaneseq
    %v637 = vshrl.u32 %v636, 7
    %v638 = vsub.s32 0, %v637
    %v639 = vrot.slane %v622, %v638
    %v640 = vlaneseq
    %v641 = vshrl.u32 %v640, 7
    %v642 = vsub.s32 0, %v641
    %v643 = vrot.slane %v605, %v642
    %v644 = vlaneseq
    %v645 = vshrl.u32 %v644, 7
    %v646 = vsub.s32 0, %v645
    %v647 = vrot.slane %v619, %v646
    %v648 = vlaneseq
    %v649 = vshrl.u32 %v648, 7
    %v650 = vsub.s32 0, %v649
    %v651 = vrot.slane %v621, %v650
    %v652 = vlaneseq
    %v653 = vshrl.u32 %v652, 7
    %v654 = vsub.s32 0, %v653
    %v655 = vrot.slane %v623, %v654
    %v664 = vadd.f32 %v627, %v536
    %v665 = vadd.f32 %v631, %v541
    %v666 = vadd.f32 %v635, %v546
    %v667 = vadd.f32 %v639, %v551
    %v668 = vadd.f32 %v643, %v556
    %v669 = vadd.f32 %v647, %v561
    %v670 = vadd.f32 %v651, %v566
    %v671 = vadd.f32 %v655, %v571
    %v672 = vld [vmem:[#allocation5] sm:$0xf]
    %v673 = vld [vmem:[#allocation5 + $0x4] sm:$0xf]
    %v674 = vld [vmem:[#allocation5 + $0x8] sm:$0xf]
    %v675 = vld [vmem:[#allocation5 + $0xc] sm:$0xf]
    %v676 = vld [vmem:[#allocation5 + $0x10] sm:$0xf]
    %v677 = vld [vmem:[#allocation5 + $0x14] sm:$0xf]
    %v678 = vld [vmem:[#allocation5 + $0x18] sm:$0xf]
    %v679 = vld [vmem:[#allocation5 + $0x1c] sm:$0xf]
    %v680 = vunpack.c.l.bf16 %v672
    %v681 = vunpack.c.l.bf16 %v673
    %v682 = vunpack.c.l.bf16 %v674
    %v683 = vunpack.c.l.bf16 %v675
    %v684 = vunpack.c.l.bf16 %v676
    %v685 = vunpack.c.l.bf16 %v677
    %v686 = vunpack.c.l.bf16 %v678
    %v687 = vunpack.c.l.bf16 %v679
    %v688 = vadd.f32 %v664, %v680
    %v689 = vadd.f32 %v665, %v681
    %v690 = vadd.f32 %v666, %v682
    %v691 = vadd.f32 %v667, %v683
    %v692 = vadd.f32 %v668, %v684
    %v693 = vadd.f32 %v669, %v685
    %v694 = vadd.f32 %v670, %v686
    %v695 = vadd.f32 %v671, %v687
    %v696 = vtanh.pop %v688
    %v697 = vtanh.pop %v689
    %v698 = vtanh.pop %v690
    %v699 = vtanh.pop %v691
    %v700 = vtanh.pop %v692
    %v701 = vtanh.pop %v693
    %v702 = vtanh.pop %v694
    %v703 = vtanh.pop %v695
    %v704 = vld [vmem:[%s7] sm:$0x1]
    %v706 = vlaneseq
    %v707 = vshrl.u32 %v706, 7
    %v708 = vsub.s32 0, %v707
    %v709 = vrot.slane %v704, %v708
    %v711 = vmul.f32 %v696, %v709
    %v712 = vmul.f32 %v697, %v709
    %v713 = vmul.f32 %v698, %v709
    %v714 = vmul.f32 %v699, %v709
    %v715 = vmul.f32 %v700, %v709
    %v716 = vmul.f32 %v701, %v709
    %v717 = vmul.f32 %v702, %v709
    %v718 = vmul.f32 %v703, %v709
    %vm719 = vcmask 130048
    %v720 = vsel %vm719, %v711, 0.0
    %721 = vadd.xlane.f32.xlu0 %v720
    %v722 = vpop.xlane.xlu0 %721
    %v723 = vsel %vm719, %v712, 0.0
    %724 = vadd.xlane.f32.xlu0 %v723
    %v725 = vpop.xlane.xlu0 %724
    %v726 = vsel %vm719, %v713, 0.0
    %727 = vadd.xlane.f32.xlu0 %v726
    %v728 = vpop.xlane.xlu0 %727
    %v729 = vsel %vm719, %v714, 0.0
    %730 = vadd.xlane.f32.xlu0 %v729
    %v731 = vpop.xlane.xlu0 %730
    %v732 = vsel %vm719, %v715, 0.0
    %733 = vadd.xlane.f32.xlu0 %v732
    %v734 = vpop.xlane.xlu0 %733
    %v735 = vsel %vm719, %v716, 0.0
    %736 = vadd.xlane.f32.xlu0 %v735
    %v737 = vpop.xlane.xlu0 %736
    %v738 = vsel %vm719, %v717, 0.0
    %739 = vadd.xlane.f32.xlu0 %v738
    %v740 = vpop.xlane.xlu0 %739
    %v741 = vsel %vm719, %v718, 0.0
    %742 = vadd.xlane.f32.xlu0 %v741
    %v743 = vpop.xlane.xlu0 %742
    %v744 = vld [vmem:[%s0] sm:$0xff]
    %vm745 = vcmp.ne.s32.totalorder %v744, 0
    %v754 = vlaneseq
    %v755 = vand.u32 %v754, 127
    %v756 = vlaneseq
    %v757 = vshrl.u32 %v756, 7
    %v758 = vsub.s32 %v755, %v757
    %v759 = vrot.slane %v722, %v758
    %v760 = vlaneseq
    %v761 = vshrl.u32 %v760, 7
    %v762 = vsub.s32 %v755, %v761
    %v763 = vrot.slane %v725, %v762
    %v764 = vlaneseq
    %v765 = vshrl.u32 %v764, 7
    %v766 = vsub.s32 %v755, %v765
    %v767 = vrot.slane %v728, %v766
    %v768 = vlaneseq
    %v769 = vshrl.u32 %v768, 7
    %v770 = vsub.s32 %v755, %v769
    %v771 = vrot.slane %v731, %v770
    %v772 = vlaneseq
    %v773 = vshrl.u32 %v772, 7
    %v774 = vsub.s32 %v755, %v773
    %v775 = vrot.slane %v734, %v774
    %v776 = vlaneseq
    %v777 = vshrl.u32 %v776, 7
    %v778 = vsub.s32 %v755, %v777
    %v779 = vrot.slane %v737, %v778
    %v780 = vlaneseq
    %v781 = vshrl.u32 %v780, 7
    %v782 = vsub.s32 %v755, %v781
    %v783 = vrot.slane %v740, %v782
    %v784 = vlaneseq
    %v785 = vshrl.u32 %v784, 7
    %v786 = vsub.s32 %v755, %v785
    %v787 = vrot.slane %v743, %v786
    %vm788 = vcmask 1041409
    %v789 = vsel %vm788, %v763, %v759
    %vm790 = vcmask 1042434
    %v791 = vsel %vm790, %v767, %v789
    %vm792 = vcmask 1043459
    %v793 = vsel %vm792, %v771, %v791
    %vm794 = vcmask 1044484
    %v795 = vsel %vm794, %v775, %v793
    %vm796 = vcmask 1045509
    %v797 = vsel %vm796, %v779, %v795
    %vm798 = vcmask 1046534
    %v799 = vsel %vm798, %v783, %v797
    %vm800 = vcmask 1047559
    %v801 = vsel %vm800, %v787, %v799
    %v803 = vsel %vm745, -inf, %v801
    %vm804 = vcmask 64512
    %v805 = vsel %vm804, %v803, -inf
    %806 = vmax.xlane.f32.xlu0 %v805
    %v807 = vpop.xlane.xlu0 %806
    %v808 = vsub.f32 %v803, %v807
    %v809 = vmul.f32 %v808, 1.442695
    %v810 = vpow.pop %v809
    %v811 = vsel %vm804, %v810, 0.0
    %812 = vadd.xlane.f32.xlu0 %v811
    %v813 = vpop.xlane.xlu0 %812
    %v814 = vrcp.pop %v813
    %v815 = vmul.f32 %v810, %v814
    %v816 = vpack.c.bf16 %v815, %v815
    %v819 = vunpack.c.l.s4 1966171168
    %v820 = vunpack.c.0.s8 %v819
    %v821 = vlaneseq
    %v822 = vshrl.u32 %v821, 7
    %v823 = vsub.s32 %v820, %v822
    %v824 = vrot.slane %v816, %v823
    %v825 = vcombine.high %v824, %v824
    %v827 = vunpack.c.l.s4 1966171168
    %v828 = vunpack.c.0.s8 %v827
    %v829 = vlaneseq
    %v830 = vshrl.u32 %v829, 7
    %v831 = vsub.s32 %v828, %v830
    %v832 = vrot.slane %v824, %v831
    %v834 = vunpack.c.l.s4 1966171168
    %v835 = vunpack.c.0.s8 %v834
    %v836 = vlaneseq
    %v837 = vshrl.u32 %v836, 7
    %v838 = vsub.s32 %v835, %v837
    %v839 = vrot.slane %v825, %v838
    %v840 = vcombine.high %v832, %v832
    %v841 = vcombine.high %v839, %v839
    %v842 = vunpack.i.l.s16 %v832
    %v843 = vunpack.i.h.s16 %v832
    %v844 = vunpack.i.l.s16 %v839
    %v845 = vunpack.i.h.s16 %v839
    %v846 = vunpack.i.l.s16 %v840
    %v847 = vunpack.i.h.s16 %v840
    %v848 = vunpack.i.l.s16 %v841
    %v849 = vunpack.i.h.s16 %v841
    %v850 = vld [vmem:[#allocation7] sm:$0xf]
    %v851 = vld [vmem:[#allocation7 + $0x4] sm:$0xf]
    %v852 = vld [vmem:[#allocation7 + $0x8] sm:$0xf]
    %v853 = vld [vmem:[#allocation7 + $0xc] sm:$0xf]
    %v854 = vld [vmem:[#allocation7 + $0x10] sm:$0xf]
    %v855 = vld [vmem:[#allocation7 + $0x14] sm:$0xf]
    %v856 = vld [vmem:[#allocation7 + $0x18] sm:$0xf]
    %v857 = vld [vmem:[#allocation7 + $0x1c] sm:$0xf]
    %v858 = vpack.i.b16 %v842, %v842
    %v859 = vlaneseq
    %v860 = vshrl.u32 %v859, 7
    %v861 = vsub.s32 0, %v860
    %v862 = vrot.slane %v858, %v861
    %v864 = vsel %vm804, %v862, 0
    %vm866 = vcmask 1043456
    %v868 = vsel %vm866, %v850, 0
    %870 = vmatprep.subr.bf16.mxu0 0
    %871 = vmatpush1.bf16.msra.mxu0 0
    %872 = vmatprep.subr.bf16.mxu0 0
    %873 = vmatpush1.bf16.msra.mxu0 0
    %874 = vmatprep.subr.bf16.mxu0 0
    %875 = vmatpush1.bf16.msra.mxu0 0
    %876 = vmatprep.subr.bf16.mxu0 0
    %877 = vmatpush1.bf16.msra.mxu0 0
    %878 = vmatprep.subr.bf16.mxu0 0
    %879 = vmatpush1.bf16.msra.mxu0 0
    %880 = vmatprep.subr.bf16.mxu0 0
    %881 = vmatpush1.bf16.msra.mxu0 0
    %882 = vmatprep.subr.bf16.mxu0 0
    %883 = vmatpush1.bf16.msra.mxu0 0
    %884 = vmatprep.subr.bf16.mxu0 0
    %885 = vmatpush1.bf16.msra.mxu0 %v868
    %886 = vmatprep.subr.bf16.mxu0 0
    %887 = vmatpush2.bf16.msra.mxu0 0
    %888 = vmatprep.subr.bf16.mxu0 0
    %889 = vmatpush2.bf16.msra.mxu0 0
    %890 = vmatprep.subr.bf16.mxu0 0
    %891 = vmatpush2.bf16.msra.mxu0 0
    %892 = vmatprep.subr.bf16.mxu0 0
    %893 = vmatpush2.bf16.msra.mxu0 0
    %894 = vmatprep.subr.bf16.mxu0 0
    %895 = vmatpush2.bf16.msra.mxu0 0
    %896 = vmatprep.subr.bf16.mxu0 0
    %897 = vmatpush2.bf16.msra.mxu0 0
    %898 = vmatprep.subr.bf16.mxu0 0
    %899 = vmatpush2.bf16.msra.mxu0 0
    %900 = vmatprep.subr.bf16.mxu0 0
    %901 = vmatpush2.bf16.msra.mxu0 0
    %902 = vmatprep.mubr.bf16.mxu0 0
    %903 = vmatmul.mubr.bf16.gmra.mxu0 %v864
    %v904 = vpop.f32.mrf.mxu0
    %v905 = vadd.f32 0.0, %v904
    %v906 = vpop.f32.mrf.mxu0
    %v907 = vpop.f32.mrf.mxu0
    %v908 = vpop.f32.mrf.mxu0
    %909 = vdwg.mxu0
    %v910 = vpack.i.b16 %v843, %v843
    %v911 = vlaneseq
    %v912 = vshrl.u32 %v911, 7
    %v913 = vsub.s32 0, %v912
    %v914 = vrot.slane %v910, %v913
    %v916 = vsel %vm804, %v914, 0
    %v919 = vsel %vm866, %v851, 0
    %921 = vmatprep.subr.bf16.mxu0 0
    %922 = vmatpush1.bf16.msra.mxu0 0
    %923 = vmatprep.subr.bf16.mxu0 0
    %924 = vmatpush1.bf16.msra.mxu0 0
    %925 = vmatprep.subr.bf16.mxu0 0
    %926 = vmatpush1.bf16.msra.mxu0 0
    %927 = vmatprep.subr.bf16.mxu0 0
    %928 = vmatpush1.bf16.msra.mxu0 0
    %929 = vmatprep.subr.bf16.mxu0 0
    %930 = vmatpush1.bf16.msra.mxu0 0
    %931 = vmatprep.subr.bf16.mxu0 0
    %932 = vmatpush1.bf16.msra.mxu0 0
    %933 = vmatprep.subr.bf16.mxu0 0
    %934 = vmatpush1.bf16.msra.mxu0 0
    %935 = vmatprep.subr.bf16.mxu0 0
    %936 = vmatpush1.bf16.msra.mxu0 %v919
    %937 = vmatprep.subr.bf16.mxu0 0
    %938 = vmatpush2.bf16.msra.mxu0 0
    %939 = vmatprep.subr.bf16.mxu0 0
    %940 = vmatpush2.bf16.msra.mxu0 0
    %941 = vmatprep.subr.bf16.mxu0 0
    %942 = vmatpush2.bf16.msra.mxu0 0
    %943 = vmatprep.subr.bf16.mxu0 0
    %944 = vmatpush2.bf16.msra.mxu0 0
    %945 = vmatprep.subr.bf16.mxu0 0
    %946 = vmatpush2.bf16.msra.mxu0 0
    %947 = vmatprep.subr.bf16.mxu0 0
    %948 = vmatpush2.bf16.msra.mxu0 0
    %949 = vmatprep.subr.bf16.mxu0 0
    %950 = vmatpush2.bf16.msra.mxu0 0
    %951 = vmatprep.subr.bf16.mxu0 0
    %952 = vmatpush2.bf16.msra.mxu0 0
    %953 = vmatprep.mubr.bf16.mxu0 0
    %954 = vmatmul.mubr.bf16.gmra.mxu0 %v916
    %v955 = vpop.f32.mrf.mxu0
    %v956 = vadd.f32 0.0, %v955
    %v957 = vpop.f32.mrf.mxu0
    %v958 = vpop.f32.mrf.mxu0
    %v959 = vpop.f32.mrf.mxu0
    %960 = vdwg.mxu0
    %v961 = vpack.i.b16 %v844, %v844
    %v962 = vlaneseq
    %v963 = vshrl.u32 %v962, 7
    %v964 = vsub.s32 0, %v963
    %v965 = vrot.slane %v961, %v964
    %v967 = vsel %vm804, %v965, 0
    %v970 = vsel %vm866, %v852, 0
    %972 = vmatprep.subr.bf16.mxu0 0
    %973 = vmatpush1.bf16.msra.mxu0 0
    %974 = vmatprep.subr.bf16.mxu0 0
    %975 = vmatpush1.bf16.msra.mxu0 0
    %976 = vmatprep.subr.bf16.mxu0 0
    %977 = vmatpush1.bf16.msra.mxu0 0
    %978 = vmatprep.subr.bf16.mxu0 0
    %979 = vmatpush1.bf16.msra.mxu0 0
    %980 = vmatprep.subr.bf16.mxu0 0
    %981 = vmatpush1.bf16.msra.mxu0 0
    %982 = vmatprep.subr.bf16.mxu0 0
    %983 = vmatpush1.bf16.msra.mxu0 0
    %984 = vmatprep.subr.bf16.mxu0 0
    %985 = vmatpush1.bf16.msra.mxu0 0
    %986 = vmatprep.subr.bf16.mxu0 0
    %987 = vmatpush1.bf16.msra.mxu0 %v970
    %988 = vmatprep.subr.bf16.mxu0 0
    %989 = vmatpush2.bf16.msra.mxu0 0
    %990 = vmatprep.subr.bf16.mxu0 0
    %991 = vmatpush2.bf16.msra.mxu0 0
    %992 = vmatprep.subr.bf16.mxu0 0
    %993 = vmatpush2.bf16.msra.mxu0 0
    %994 = vmatprep.subr.bf16.mxu0 0
    %995 = vmatpush2.bf16.msra.mxu0 0
    %996 = vmatprep.subr.bf16.mxu0 0
    %997 = vmatpush2.bf16.msra.mxu0 0
    %998 = vmatprep.subr.bf16.mxu0 0
    %999 = vmatpush2.bf16.msra.mxu0 0
    %1000 = vmatprep.subr.bf16.mxu0 0
    %1001 = vmatpush2.bf16.msra.mxu0 0
    %1002 = vmatprep.subr.bf16.mxu0 0
    %1003 = vmatpush2.bf16.msra.mxu0 0
    %1004 = vmatprep.mubr.bf16.mxu0 0
    %1005 = vmatmul.mubr.bf16.gmra.mxu0 %v967
    %v1006 = vpop.f32.mrf.mxu0
    %v1007 = vadd.f32 0.0, %v1006
    %v1008 = vpop.f32.mrf.mxu0
    %v1009 = vpop.f32.mrf.mxu0
    %v1010 = vpop.f32.mrf.mxu0
    %1011 = vdwg.mxu0
    %v1012 = vpack.i.b16 %v845, %v845
    %v1013 = vlaneseq
    %v1014 = vshrl.u32 %v1013, 7
    %v1015 = vsub.s32 0, %v1014
    %v1016 = vrot.slane %v1012, %v1015
    %v1018 = vsel %vm804, %v1016, 0
    %v1021 = vsel %vm866, %v853, 0
    %1023 = vmatprep.subr.bf16.mxu0 0
    %1024 = vmatpush1.bf16.msra.mxu0 0
    %1025 = vmatprep.subr.bf16.mxu0 0
    %1026 = vmatpush1.bf16.msra.mxu0 0
    %1027 = vmatprep.subr.bf16.mxu0 0
    %1028 = vmatpush1.bf16.msra.mxu0 0
    %1029 = vmatprep.subr.bf16.mxu0 0
    %1030 = vmatpush1.bf16.msra.mxu0 0
    %1031 = vmatprep.subr.bf16.mxu0 0
    %1032 = vmatpush1.bf16.msra.mxu0 0
    %1033 = vmatprep.subr.bf16.mxu0 0
    %1034 = vmatpush1.bf16.msra.mxu0 0
    %1035 = vmatprep.subr.bf16.mxu0 0
    %1036 = vmatpush1.bf16.msra.mxu0 0
    %1037 = vmatprep.subr.bf16.mxu0 0
    %1038 = vmatpush1.bf16.msra.mxu0 %v1021
    %1039 = vmatprep.subr.bf16.mxu0 0
    %1040 = vmatpush2.bf16.msra.mxu0 0
    %1041 = vmatprep.subr.bf16.mxu0 0
    %1042 = vmatpush2.bf16.msra.mxu0 0
    %1043 = vmatprep.subr.bf16.mxu0 0
    %1044 = vmatpush2.bf16.msra.mxu0 0
    %1045 = vmatprep.subr.bf16.mxu0 0
    %1046 = vmatpush2.bf16.msra.mxu0 0
    %1047 = vmatprep.subr.bf16.mxu0 0
    %1048 = vmatpush2.bf16.msra.mxu0 0
    %1049 = vmatprep.subr.bf16.mxu0 0
    %1050 = vmatpush2.bf16.msra.mxu0 0
    %1051 = vmatprep.subr.bf16.mxu0 0
    %1052 = vmatpush2.bf16.msra.mxu0 0
    %1053 = vmatprep.subr.bf16.mxu0 0
    %1054 = vmatpush2.bf16.msra.mxu0 0
    %1055 = vmatprep.mubr.bf16.mxu0 0
    %1056 = vmatmul.mubr.bf16.gmra.mxu0 %v1018
    %v1057 = vpop.f32.mrf.mxu0
    %v1058 = vadd.f32 0.0, %v1057
    %v1059 = vpop.f32.mrf.mxu0
    %v1060 = vpop.f32.mrf.mxu0
    %v1061 = vpop.f32.mrf.mxu0
    %1062 = vdwg.mxu0
    %v1063 = vpack.i.b16 %v846, %v846
    %v1064 = vlaneseq
    %v1065 = vshrl.u32 %v1064, 7
    %v1066 = vsub.s32 0, %v1065
    %v1067 = vrot.slane %v1063, %v1066
    %v1069 = vsel %vm804, %v1067, 0
    %v1072 = vsel %vm866, %v854, 0
    %1074 = vmatprep.subr.bf16.mxu0 0
    %1075 = vmatpush1.bf16.msra.mxu0 0
    %1076 = vmatprep.subr.bf16.mxu0 0
    %1077 = vmatpush1.bf16.msra.mxu0 0
    %1078 = vmatprep.subr.bf16.mxu0 0
    %1079 = vmatpush1.bf16.msra.mxu0 0
    %1080 = vmatprep.subr.bf16.mxu0 0
    %1081 = vmatpush1.bf16.msra.mxu0 0
    %1082 = vmatprep.subr.bf16.mxu0 0
    %1083 = vmatpush1.bf16.msra.mxu0 0
    %1084 = vmatprep.subr.bf16.mxu0 0
    %1085 = vmatpush1.bf16.msra.mxu0 0
    %1086 = vmatprep.subr.bf16.mxu0 0
    %1087 = vmatpush1.bf16.msra.mxu0 0
    %1088 = vmatprep.subr.bf16.mxu0 0
    %1089 = vmatpush1.bf16.msra.mxu0 %v1072
    %1090 = vmatprep.subr.bf16.mxu0 0
    %1091 = vmatpush2.bf16.msra.mxu0 0
    %1092 = vmatprep.subr.bf16.mxu0 0
    %1093 = vmatpush2.bf16.msra.mxu0 0
    %1094 = vmatprep.subr.bf16.mxu0 0
    %1095 = vmatpush2.bf16.msra.mxu0 0
    %1096 = vmatprep.subr.bf16.mxu0 0
    %1097 = vmatpush2.bf16.msra.mxu0 0
    %1098 = vmatprep.subr.bf16.mxu0 0
    %1099 = vmatpush2.bf16.msra.mxu0 0
    %1100 = vmatprep.subr.bf16.mxu0 0
    %1101 = vmatpush2.bf16.msra.mxu0 0
    %1102 = vmatprep.subr.bf16.mxu0 0
    %1103 = vmatpush2.bf16.msra.mxu0 0
    %1104 = vmatprep.subr.bf16.mxu0 0
    %1105 = vmatpush2.bf16.msra.mxu0 0
    %1106 = vmatprep.mubr.bf16.mxu0 0
    %1107 = vmatmul.mubr.bf16.gmra.mxu0 %v1069
    %v1108 = vpop.f32.mrf.mxu0
    %v1109 = vadd.f32 0.0, %v1108
    %v1110 = vpop.f32.mrf.mxu0
    %v1111 = vpop.f32.mrf.mxu0
    %v1112 = vpop.f32.mrf.mxu0
    %1113 = vdwg.mxu0
    %v1114 = vpack.i.b16 %v847, %v847
    %v1115 = vlaneseq
    %v1116 = vshrl.u32 %v1115, 7
    %v1117 = vsub.s32 0, %v1116
    %v1118 = vrot.slane %v1114, %v1117
    %v1120 = vsel %vm804, %v1118, 0
    %v1123 = vsel %vm866, %v855, 0
    %1125 = vmatprep.subr.bf16.mxu0 0
    %1126 = vmatpush1.bf16.msra.mxu0 0
    %1127 = vmatprep.subr.bf16.mxu0 0
    %1128 = vmatpush1.bf16.msra.mxu0 0
    %1129 = vmatprep.subr.bf16.mxu0 0
    %1130 = vmatpush1.bf16.msra.mxu0 0
    %1131 = vmatprep.subr.bf16.mxu0 0
    %1132 = vmatpush1.bf16.msra.mxu0 0
    %1133 = vmatprep.subr.bf16.mxu0 0
    %1134 = vmatpush1.bf16.msra.mxu0 0
    %1135 = vmatprep.subr.bf16.mxu0 0
    %1136 = vmatpush1.bf16.msra.mxu0 0
    %1137 = vmatprep.subr.bf16.mxu0 0
    %1138 = vmatpush1.bf16.msra.mxu0 0
    %1139 = vmatprep.subr.bf16.mxu0 0
    %1140 = vmatpush1.bf16.msra.mxu0 %v1123
    %1141 = vmatprep.subr.bf16.mxu0 0
    %1142 = vmatpush2.bf16.msra.mxu0 0
    %1143 = vmatprep.subr.bf16.mxu0 0
    %1144 = vmatpush2.bf16.msra.mxu0 0
    %1145 = vmatprep.subr.bf16.mxu0 0
    %1146 = vmatpush2.bf16.msra.mxu0 0
    %1147 = vmatprep.subr.bf16.mxu0 0
    %1148 = vmatpush2.bf16.msra.mxu0 0
    %1149 = vmatprep.subr.bf16.mxu0 0
    %1150 = vmatpush2.bf16.msra.mxu0 0
    %1151 = vmatprep.subr.bf16.mxu0 0
    %1152 = vmatpush2.bf16.msra.mxu0 0
    %1153 = vmatprep.subr.bf16.mxu0 0
    %1154 = vmatpush2.bf16.msra.mxu0 0
    %1155 = vmatprep.subr.bf16.mxu0 0
    %1156 = vmatpush2.bf16.msra.mxu0 0
    %1157 = vmatprep.mubr.bf16.mxu0 0
    %1158 = vmatmul.mubr.bf16.gmra.mxu0 %v1120
    %v1159 = vpop.f32.mrf.mxu0
    %v1160 = vadd.f32 0.0, %v1159
    %v1161 = vpop.f32.mrf.mxu0
    %v1162 = vpop.f32.mrf.mxu0
    %v1163 = vpop.f32.mrf.mxu0
    %1164 = vdwg.mxu0
    %v1165 = vpack.i.b16 %v848, %v848
    %v1166 = vlaneseq
    %v1167 = vshrl.u32 %v1166, 7
    %v1168 = vsub.s32 0, %v1167
    %v1169 = vrot.slane %v1165, %v1168
    %v1171 = vsel %vm804, %v1169, 0
    %v1174 = vsel %vm866, %v856, 0
    %1176 = vmatprep.subr.bf16.mxu0 0
    %1177 = vmatpush1.bf16.msra.mxu0 0
    %1178 = vmatprep.subr.bf16.mxu0 0
    %1179 = vmatpush1.bf16.msra.mxu0 0
    %1180 = vmatprep.subr.bf16.mxu0 0
    %1181 = vmatpush1.bf16.msra.mxu0 0
    %1182 = vmatprep.subr.bf16.mxu0 0
    %1183 = vmatpush1.bf16.msra.mxu0 0
    %1184 = vmatprep.subr.bf16.mxu0 0
    %1185 = vmatpush1.bf16.msra.mxu0 0
    %1186 = vmatprep.subr.bf16.mxu0 0
    %1187 = vmatpush1.bf16.msra.mxu0 0
    %1188 = vmatprep.subr.bf16.mxu0 0
    %1189 = vmatpush1.bf16.msra.mxu0 0
    %1190 = vmatprep.subr.bf16.mxu0 0
    %1191 = vmatpush1.bf16.msra.mxu0 %v1174
    %1192 = vmatprep.subr.bf16.mxu0 0
    %1193 = vmatpush2.bf16.msra.mxu0 0
    %1194 = vmatprep.subr.bf16.mxu0 0
    %1195 = vmatpush2.bf16.msra.mxu0 0
    %1196 = vmatprep.subr.bf16.mxu0 0
    %1197 = vmatpush2.bf16.msra.mxu0 0
    %1198 = vmatprep.subr.bf16.mxu0 0
    %1199 = vmatpush2.bf16.msra.mxu0 0
    %1200 = vmatprep.subr.bf16.mxu0 0
    %1201 = vmatpush2.bf16.msra.mxu0 0
    %1202 = vmatprep.subr.bf16.mxu0 0
    %1203 = vmatpush2.bf16.msra.mxu0 0
    %1204 = vmatprep.subr.bf16.mxu0 0
    %1205 = vmatpush2.bf16.msra.mxu0 0
    %1206 = vmatprep.subr.bf16.mxu0 0
    %1207 = vmatpush2.bf16.msra.mxu0 0
    %1208 = vmatprep.mubr.bf16.mxu0 0
    %1209 = vmatmul.mubr.bf16.gmra.mxu0 %v1171
    %v1210 = vpop.f32.mrf.mxu0
    %v1211 = vadd.f32 0.0, %v1210
    %v1212 = vpop.f32.mrf.mxu0
    %v1213 = vpop.f32.mrf.mxu0
    %v1214 = vpop.f32.mrf.mxu0
    %1215 = vdwg.mxu0
    %v1216 = vpack.i.b16 %v849, %v849
    %v1217 = vlaneseq
    %v1218 = vshrl.u32 %v1217, 7
    %v1219 = vsub.s32 0, %v1218
    %v1220 = vrot.slane %v1216, %v1219
    %v1222 = vsel %vm804, %v1220, 0
    %v1225 = vsel %vm866, %v857, 0
    %1227 = vmatprep.subr.bf16.mxu0 0
    %1228 = vmatpush1.bf16.msra.mxu0 0
    %1229 = vmatprep.subr.bf16.mxu0 0
    %1230 = vmatpush1.bf16.msra.mxu0 0
    %1231 = vmatprep.subr.bf16.mxu0 0
    %1232 = vmatpush1.bf16.msra.mxu0 0
    %1233 = vmatprep.subr.bf16.mxu0 0
    %1234 = vmatpush1.bf16.msra.mxu0 0
    %1235 = vmatprep.subr.bf16.mxu0 0
    %1236 = vmatpush1.bf16.msra.mxu0 0
    %1237 = vmatprep.subr.bf16.mxu0 0
    %1238 = vmatpush1.bf16.msra.mxu0 0
    %1239 = vmatprep.subr.bf16.mxu0 0
    %1240 = vmatpush1.bf16.msra.mxu0 0
    %1241 = vmatprep.subr.bf16.mxu0 0
    %1242 = vmatpush1.bf16.msra.mxu0 %v1225
    %1243 = vmatprep.subr.bf16.mxu0 0
    %1244 = vmatpush2.bf16.msra.mxu0 0
    %1245 = vmatprep.subr.bf16.mxu0 0
    %1246 = vmatpush2.bf16.msra.mxu0 0
    %1247 = vmatprep.subr.bf16.mxu0 0
    %1248 = vmatpush2.bf16.msra.mxu0 0
    %1249 = vmatprep.subr.bf16.mxu0 0
    %1250 = vmatpush2.bf16.msra.mxu0 0
    %1251 = vmatprep.subr.bf16.mxu0 0
    %1252 = vmatpush2.bf16.msra.mxu0 0
    %1253 = vmatprep.subr.bf16.mxu0 0
    %1254 = vmatpush2.bf16.msra.mxu0 0
    %1255 = vmatprep.subr.bf16.mxu0 0
    %1256 = vmatpush2.bf16.msra.mxu0 0
    %1257 = vmatprep.subr.bf16.mxu0 0
    %1258 = vmatpush2.bf16.msra.mxu0 0
    %1259 = vmatprep.mubr.bf16.mxu0 0
    %1260 = vmatmul.mubr.bf16.gmra.mxu0 %v1222
    %v1261 = vpop.f32.mrf.mxu0
    %v1262 = vadd.f32 0.0, %v1261
    %v1263 = vpop.f32.mrf.mxu0
    %v1264 = vpop.f32.mrf.mxu0
    %v1265 = vpop.f32.mrf.mxu0
    %1266 = vdwg.mxu0
    %v1275 = vrot.slane %v956, 7
    %v1276 = vsel %vm788, %v1275, %v905
    %v1277 = vrot.slane %v1007, 6
    %v1278 = vsel %vm790, %v1277, %v1276
    %v1279 = vrot.slane %v1058, 5
    %v1280 = vsel %vm792, %v1279, %v1278
    %v1281 = vrot.slane %v1109, 4
    %v1282 = vsel %vm794, %v1281, %v1280
    %v1283 = vrot.slane %v1160, 3
    %v1284 = vsel %vm796, %v1283, %v1282
    %v1285 = vrot.slane %v1211, 2
    %v1286 = vsel %vm798, %v1285, %v1284
    %v1287 = vrot.slane %v1262, 1
    %v1288 = vsel %vm800, %v1287, %v1286
    %1290 = vst.msk [vmem:[#allocation10] sm:$0xff] %vm102, %v1288
    %1291 = vst.msk [vmem:[#allocation11] sm:$0xff] %vm804, %v815
    // Predicated region
    $region50: #{tpu_custom_call.1} parent=1 // pred_check
      _
    $region51: #{tpu_custom_call.1} parent=1 // pred_check_branch
      %1293 = sbr.rel (0) target = $region53
    $region52: #{tpu_custom_call.1} parent=1 // pred_region
      %s1295 = ssub.s32 128, 128
      %1296 = vsyncadd [#allocation4], %s1295
      %s1298 = sshll.u32 [#allocation10], 4
      %s1299 = int_to_ptr.vmem [resolvable:$true] %s1298
      %1301 = dma.vmem_to_hbm [thread:$0]  %s1299, 128, %s8, [#allocation4]
    $region53: #{tpu_custom_call.1} parent=1 // pred_fallthru
      _
    // Predicated region
    $region54: #{tpu_custom_call.1} parent=1 // pred_check
      _
    $region55: #{tpu_custom_call.1} parent=1 // pred_check_branch
      %1303 = sbr.rel (0) target = $region57
    $region56: #{tpu_custom_call.1} parent=1 // pred_region
      %s1305 = ssub.s32 128, 128
      %1306 = vsyncadd [#allocation12], %s1305
      %s1308 = sshll.u32 [#allocation11], 4
      %s1309 = int_to_ptr.vmem [resolvable:$true] %s1308
      %1311 = dma.vmem_to_hbm [thread:$0]  %s1309, 128, %s9, [#allocation12]
    $region57: #{tpu_custom_call.1} parent=1 // pred_fallthru
      _
    // Predicated region
    $region58: #{tpu_custom_call.1} parent=1 // pred_check
      _
    $region59: #{tpu_custom_call.1} parent=1 // pred_check_branch
      %1313 = sbr.rel (0) target = $region61
    $region60: #{tpu_custom_call.1} parent=1 // pred_region
      %1314 = dma.done [#allocation4], 128
    $region61: #{tpu_custom_call.1} parent=1 // pred_fallthru
      _
    // Predicated region
    $region62: #{tpu_custom_call.1} parent=1 // pred_check
      _
    $region63: #{tpu_custom_call.1} parent=1 // pred_check_branch
      %1316 = sbr.rel (0) target = $region65
    $region64: #{tpu_custom_call.1} parent=1 // pred_region
      %1317 = dma.done [#allocation12], 128
    $region65: #{tpu_custom_call.1} parent=1 // pred_fallthru
      _
    %1318 = vsyncpa [#allocation3], 1
    %1319 = vsyncpa [#allocation6], 1
    %1320 = vsyncpa [#allocation9], 1
    %1321 = vsyncpa [#allocation4], 1
    %1322 = vsyncpa [#allocation12], 1

</llo_original>
